<compile_context>
chip_gen: v7x
topology: tpu7x:2x2x1
jax: 0.10.0
libtpu: 0.0.40
codegen_flags: <defaults>
</compile_context>

<pallas_src>
import math

import jax
import jax.numpy as jnp
from jax import lax
from jax.experimental import pallas as pl
from jax.experimental.pallas import tpu as pltpu


# --------------------------------------------------------------------------- #
# Small shape/tile helpers
# --------------------------------------------------------------------------- #
def _round_up(x, m):
    return ((x + m - 1) // m) * m


def _pad2(a, rows, cols):
    r, c = a.shape
    if r == rows and c == cols:
        return a
    return jnp.pad(a, ((0, rows - r), (0, cols - c)))


def _pick_tile(padded_dim, target):
    """Largest multiple of 128 <= target that divides padded_dim (itself a
    multiple of 128)."""
    for mult in range(max(target // 128, 1), 0, -1):
        t = mult * 128
        if padded_dim % t == 0:
            return t
    return 128


def _pick_tm(batch, target):
    """Batch tile: 8-aligned and balanced across M blocks so odd batch sizes
    (e.g. B=300) don't over-pad to the next multiple of the target tile."""
    mp_min = _round_up(batch, 8)
    if mp_min <= target:
        return mp_min, mp_min
    num_m = -(-mp_min // target)
    tm = _round_up(-(-batch // num_m), 8)
    mp = tm * num_m
    while mp < batch:  # rounding above already guarantees this; pure paranoia
        tm += 8
        mp = tm * num_m
    return tm, mp


# --------------------------------------------------------------------------- #
# Kernels
# --------------------------------------------------------------------------- #
def _noisy_fused_kernel(x_ref, wmu_ref, wsig_ref, eps_out_ref, eps_in_ref,
                        bias_ref, o_ref, acc_ref):
    """Large-batch training path: rebuild the rank-1 noisy-weight tile per K
    step (noise math in the matmul dtype so the VALU slot doesn't bind) and run
    a single MXU matmul in the native (out, in) weight layout (no weight.T)."""
    k = pl.program_id(2)

    @pl.when(k == 0)
    def _():
        acc_ref[...] = jnp.zeros_like(acc_ref)

    weight = wmu_ref[...] + wsig_ref[...] * (eps_out_ref[...] * eps_in_ref[...])
    acc_ref[...] += lax.dot_general(
        x_ref[...], weight,
        dimension_numbers=(((1,), (1,)), ((), ())),
        preferred_element_type=jnp.float32)

    @pl.when(k == pl.num_programs(2) - 1)
    def _():
        o_ref[...] = (acc_ref[...] + bias_ref[...]).astype(o_ref.dtype)


def _noisy_factored_kernel(x_ref, wmu_ref, wsig_ref, eps_in_ref, eps_out_ref,
                           bias_ref, o_ref, acc_mu_ref, acc_sig_ref):
    """Small-batch training path:
         y = x @ Wmu^T + ((x * eps_in) @ Wsig^T) * eps_out + bias
       Two matmuls (MXU nearly idle at tiny tm) instead of the per-K-step
       (tn, tk) epsilon-tile reconstruction; eps_out applied once per output
       tile as a lane-dense (1, tn) row at finalize."""
    k = pl.program_id(2)

    @pl.when(k == 0)
    def _():
        acc_mu_ref[...] = jnp.zeros_like(acc_mu_ref)
        acc_sig_ref[...] = jnp.zeros_like(acc_sig_ref)

    dn = (((1,), (1,)), ((), ()))
    x_tile = x_ref[...]
    acc_mu_ref[...] += lax.dot_general(
        x_tile, wmu_ref[...], dn, preferred_element_type=jnp.float32)
    acc_sig_ref[...] += lax.dot_general(
        x_tile * eps_in_ref[...], wsig_ref[...], dn,
        preferred_element_type=jnp.float32)

    @pl.when(k == pl.num_programs(2) - 1)
    def _():
        o_ref[...] = (acc_mu_ref[...] + acc_sig_ref[...] * eps_out_ref[...]
                      + bias_ref[...]).astype(o_ref.dtype)


def _linear_kernel(x_ref, wmu_ref, bias_ref, o_ref, acc_ref):
    """Eval fast path: y = x @ Wmu^T + bias_mu. Streams only weight_mu."""
    k = pl.program_id(2)

    @pl.when(k == 0)
    def _():
        acc_ref[...] = jnp.zeros_like(acc_ref)

    acc_ref[...] += lax.dot_general(
        x_ref[...], wmu_ref[...],
        dimension_numbers=(((1,), (1,)), ((), ())),
        preferred_element_type=jnp.float32)

    @pl.when(k == pl.num_programs(2) - 1)
    def _():
        o_ref[...] = (acc_ref[...] + bias_ref[...]).astype(o_ref.dtype)


# --------------------------------------------------------------------------- #
# One-time weight packing (pad + cast) and the forward wrapper
# --------------------------------------------------------------------------- #
def pack_noisy_linear_weights(weight_mu, weight_sigma, *,
                              matmul_dtype=jnp.bfloat16):
    """One-time 128-aligned padding + dtype cast of the O(out*in) weight
    matrices, so the per-call wrapper never re-pads / re-casts them."""
    out_f, in_f = weight_mu.shape
    np_ = _round_up(out_f, 128)
    kp = _round_up(in_f, 128)
    return dict(
        wmu=_pad2(weight_mu, np_, kp).astype(matmul_dtype),
        wsig=_pad2(weight_sigma, np_, kp).astype(matmul_dtype),
        out_features=out_f,
        in_features=in_f,
        matmul_dtype=matmul_dtype,
    )


def noisy_linear(x, packed, eps_in, eps_out, bias_mu, bias_sigma, *,
                 training=True, tm=512, tn=512, tk=512,
                 small_batch_tm=64, vmem_cap_bytes=48 * 1024 * 1024):
    """NoisyLinear forward. `packed` comes from pack_noisy_linear_weights();
    eps_in (in,) / eps_out (out,) are the factorized noise vectors
    (weight_epsilon = outer(eps_out, eps_in), bias_epsilon = eps_out)."""
    B, in_f = x.shape
    assert in_f == packed["in_features"]
    out_f = packed["out_features"]
    wmu, wsig = packed["wmu"], packed["wsig"]
    mdt = packed["matmul_dtype"]
    Np, Kp = wmu.shape
    out_dtype = x.dtype

    # Tile selection: divisors of the pre-padded weight dims; targets large
    # enough to sit near the HBM roofline (fewer ~0.35us grid steps).
    tm, Mp = _pick_tm(B, tm)
    tk = _pick_tile(Kp, tk)
    tn = _pick_tile(Np, tn)
    # Keep both v7x TensorCores busy: if the batch yields a single M block,
    # don't let a single N block swallow the whole parallel grid.
    if Mp == tm and Np // tn < 2 and Np >= 256:
        tn = _pick_tile(Np, max(Np // 2, 128))

    grid = (Mp // tm, Np // tn, Kp // tk)

    # Per-call padding only touches the small tensors.
    xp = _pad2(x, Mp, Kp).astype(mdt)
    if training:
        bias = (bias_mu + bias_sigma * eps_out).astype(jnp.float32)
    else:
        bias = bias_mu.astype(jnp.float32)
    bias_row = _pad2(bias.reshape(1, out_f), 1, Np)

    w_isz = jnp.dtype(mdt).itemsize
    o_isz = jnp.dtype(out_dtype).itemsize

    def run(kernel, in_specs, scratch, operands, n_weight_streams):
        vmem_bytes = (2 * tm * tk * w_isz                        # x (double-buffered)
                      + 2 * n_weight_streams * tn * tk * w_isz   # weight streams
                      + tn * tk * w_isz                          # noisy-weight temp
                      + 2 * tm * tn * o_isz                      # output tile
                      + len(scratch) * tm * tn * 4               # f32 accumulators
                      + 2 * (2 * tn + tk) * 4)                   # eps / bias rows
        vmem_limit = int(min(max(2 * vmem_bytes, 16 * 1024 * 1024),
                             vmem_cap_bytes))
        return pl.pallas_call(
            kernel,
            out_shape=jax.ShapeDtypeStruct((Mp, Np), out_dtype),
            grid_spec=pltpu.PrefetchScalarGridSpec(
                num_scalar_prefetch=0,
                grid=grid,
                in_specs=in_specs,
                out_specs=pl.BlockSpec((tm, tn), lambda i, j, k: (i, j)),
                scratch_shapes=scratch),
            compiler_params=pltpu.CompilerParams(
                dimension_semantics=("parallel", "parallel", "arbitrary"),
                vmem_limit_bytes=vmem_limit),
        )(*operands)

    x_spec = pl.BlockSpec((tm, tk), lambda i, j, k: (i, k))
    w_spec = pl.BlockSpec((tn, tk), lambda i, j, k: (j, k))
    bias_spec = pl.BlockSpec((1, tn), lambda i, j, k: (0, j))

    if not training:
        # Eval fast path: only weight_mu is streamed; no noise math at all.
        out = run(_linear_kernel,
                  [x_spec, w_spec, bias_spec],
                  [pltpu.VMEM((tm, tn), jnp.float32)],
                  (xp, wmu, bias_row),
                  n_weight_streams=1)
    else:
        eps_in_row = _pad2(eps_in.reshape(1, in_f), 1, Kp)
        eps_out_row = _pad2(eps_out.reshape(1, out_f), 1, Np)
        if tm <= small_batch_tm:
            # MXU nearly idle -> factored identity, no epsilon-tile rebuild and
            # no lane-sparse (tn, 1) eps_out column.
            out = run(
                _noisy_factored_kernel,
                [x_spec, w_spec, w_spec,
                 pl.BlockSpec((1, tk), lambda i, j, k: (0, k)),   # eps_in row
                 pl.BlockSpec((1, tn), lambda i, j, k: (0, j)),   # eps_out row
                 bias_spec],
                [pltpu.VMEM((tm, tn), jnp.float32),
                 pltpu.VMEM((tm, tn), jnp.float32)],
                (xp, wmu, wsig,
                 eps_in_row.astype(mdt),
                 eps_out_row.astype(jnp.float32),
                 bias_row),
                n_weight_streams=2)
        else:
            # Large tm: single matmul with rank-1 noisy-weight reconstruction
            # (noise math in the matmul dtype so the MXU, not the VPU, binds).
            eps_out_col = _pad2(eps_out.reshape(out_f, 1), Np, 1)
            out = run(
                _noisy_fused_kernel,
                [x_spec, w_spec, w_spec,
                 pl.BlockSpec((tn, 1), lambda i, j, k: (j, 0)),   # eps_out col
                 pl.BlockSpec((1, tk), lambda i, j, k: (0, k)),   # eps_in row
                 bias_spec],
                [pltpu.VMEM((tm, tn), jnp.float32)],
                (xp, wmu, wsig,
                 eps_out_col.astype(mdt),
                 eps_in_row.astype(mdt),
                 bias_row),
                n_weight_streams=2)

    return out[:B, :out_f]


# --------------------------------------------------------------------------- #
# Parameter / noise init matching NoisyLinear.reset_parameter + reset_noise
# --------------------------------------------------------------------------- #
def init_noisy_linear_params(key, in_features, out_features, std_init=0.5):
    """Deterministic init matching the PyTorch module, returning the
    *factorized* noise vectors (eps_in, eps_out)."""
    k_wmu, k_bmu, k_ein, k_eout = jax.random.split(key, 4)
    mu_range = 1.0 / math.sqrt(in_features)

    weight_mu = jax.random.uniform(k_wmu, (out_features, in_features),
                                   jnp.float32, -mu_range, mu_range)
    weight_sigma = jnp.full((out_features, in_features),
                            std_init / math.sqrt(in_features), jnp.float32)
    bias_mu = jax.random.uniform(k_bmu, (out_features,),
                                 jnp.float32, -mu_range, mu_range)
    bias_sigma = jnp.full((out_features,),
                          std_init / math.sqrt(out_features), jnp.float32)

    def scale_noise(k, size):
        z = jax.random.normal(k, (size,), jnp.float32)
        return jnp.sign(z) * jnp.sqrt(jnp.abs(z))

    eps_in = scale_noise(k_ein, in_features)     # (in,)
    eps_out = scale_noise(k_eout, out_features)  # (out,)  == bias_epsilon

    return weight_mu, weight_sigma, eps_in, eps_out, bias_mu, bias_sigma


# --------------------------------------------------------------------------- #
# Self-test
# --------------------------------------------------------------------------- #
if __name__ == "__main__":
    key = jax.random.PRNGKey(0)
    in_features, out_features = 32, 64
    k_params, k_x, k_x2 = jax.random.split(key, 3)

    wmu, wsig, eps_in, eps_out, bmu, bsig = init_noisy_linear_params(
        k_params, in_features, out_features)

    def reference(x, training):
        if training:
            w = wmu + wsig * jnp.outer(eps_out, eps_in)
            b = bmu + bsig * eps_out
        else:
            w, b = wmu, bmu
        return jnp.dot(x, w.T, precision=lax.Precision.HIGHEST) + b

    x_small = jax.random.normal(k_x, (8, in_features), jnp.float32)
    x_large = jax.random.normal(k_x2, (128, in_features), jnp.float32)

    packed_f32 = pack_noisy_linear_weights(wmu, wsig, matmul_dtype=jnp.float32)
    packed_bf16 = pack_noisy_linear_weights(wmu, wsig)  # default bf16-at-HBM

    # 1) f32 packing, small batch -> factored small-batch kernel (training).
    y1 = jax.block_until_ready(noisy_linear(
        x_small, packed_f32, eps_in, eps_out, bmu, bsig, training=True))
    assert y1.shape == (8, out_features)
    assert jnp.allclose(y1, reference(x_small, True), atol=1e-3, rtol=1e-3)

    # 2) f32 packing, larger batch -> fused single-matmul kernel (training).
    y2 = jax.block_until_ready(noisy_linear(
        x_large, packed_f32, eps_in, eps_out, bmu, bsig, training=True))
    assert jnp.allclose(y2, reference(x_large, True), atol=1e-3, rtol=1e-3)

    # 3) f32 packing, eval fast path (weight_mu / bias_mu only).
    y3 = jax.block_until_ready(noisy_linear(
        x_small, packed_f32, eps_in, eps_out, bmu, bsig, training=False))
    assert jnp.allclose(y3, reference(x_small, False), atol=1e-3, rtol=1e-3)

    # 4) Default bf16-at-HBM packing: numerics intentionally differ from the
    #    f32 reference (documented/expected for NoisyLinear in RL); loose check.
    y4 = jax.block_until_ready(noisy_linear(
        x_small, packed_bf16, eps_in, eps_out, bmu, bsig, training=True))
    assert float(jnp.max(jnp.abs(y4 - reference(x_small, True)))) < 0.25

    print("KERNEL_OK")
</pallas_src>

<mosaic_0001>
module attributes {stable_mosaic.version = 11 : i64} {
  func.func @_noisy_factored_kernel(%arg0: i32, %arg1: i32, %arg2: i32, %arg3: memref<8x128xf32, #tpu.memory_space<vmem>>, %arg4: memref<128x128xf32, #tpu.memory_space<vmem>>, %arg5: memref<128x128xf32, #tpu.memory_space<vmem>>, %arg6: memref<1x128xf32, #tpu.memory_space<vmem>>, %arg7: memref<1x128xf32, #tpu.memory_space<vmem>>, %arg8: memref<1x128xf32, #tpu.memory_space<vmem>>, %arg9: memref<8x128xf32, #tpu.memory_space<vmem>>, %arg10: memref<8x128xf32, #tpu.memory_space<vmem>>, %arg11: memref<8x128xf32, #tpu.memory_space<vmem>>) attributes {dimension_semantics = [#tpu.dimension_semantics<parallel>, #tpu.dimension_semantics<parallel>, #tpu.dimension_semantics<arbitrary>], iteration_bounds = array<i64: 1, 1, 1>, scalar_prefetch = 0 : i64, scratch_operands = 2 : i64, tpu.core_type = #tpu.core_type<tc>, window_params = [{transform_indices = @transform_0, window_bounds = array<i64: 8, 128>}, {transform_indices = @transform_1, window_bounds = array<i64: 128, 128>}, {transform_indices = @transform_2, window_bounds = array<i64: 128, 128>}, {transform_indices = @transform_3, window_bounds = array<i64: 1, 128>}, {transform_indices = @transform_4, window_bounds = array<i64: 1, 128>}, {transform_indices = @transform_5, window_bounds = array<i64: 1, 128>}, {transform_indices = @transform_6, window_bounds = array<i64: 8, 128>}]} {
    %c0_i32 = arith.constant 0 : i32
    %0 = arith.cmpi eq, %arg2, %c0_i32 : i32
    %1 = arith.extui %0 : i1 to i32
    %c0_i32_0 = arith.constant 0 : i32
    %2 = arith.cmpi ne, %1, %c0_i32_0 : i32
    scf.if %2 {
      %cst_19 = arith.constant 0.000000e+00 : f32
      %20 = vector.broadcast %cst_19 : f32 to vector<8x128xf32>
      %c0_20 = arith.constant 0 : index
      %c0_21 = arith.constant 0 : index
      %21 = vector.load %arg10[%c0_20, %c0_21] : memref<8x128xf32, #tpu.memory_space<vmem>>, vector<8x128xf32>
      tpu.vector_store %arg10[%c0_20, %c0_21], %20 {strides = array<i32>} : memref<8x128xf32, #tpu.memory_space<vmem>>, vector<8x128xf32>,
      %cst_22 = arith.constant 0.000000e+00 : f32
      %22 = vector.broadcast %cst_22 : f32 to vector<8x128xf32>
      %c0_23 = arith.constant 0 : index
      %c0_24 = arith.constant 0 : index
      %23 = vector.load %arg11[%c0_23, %c0_24] : memref<8x128xf32, #tpu.memory_space<vmem>>, vector<8x128xf32>
      tpu.vector_store %arg11[%c0_23, %c0_24], %22 {strides = array<i32>} : memref<8x128xf32, #tpu.memory_space<vmem>>, vector<8x128xf32>,
    } else {
    }
    %c0 = arith.constant 0 : index
    %c0_1 = arith.constant 0 : index
    %3 = vector.load %arg3[%c0, %c0_1] : memref<8x128xf32, #tpu.memory_space<vmem>>, vector<8x128xf32>
    %c0_2 = arith.constant 0 : index
    %c0_3 = arith.constant 0 : index
    %4 = vector.load %arg10[%c0_2, %c0_3] : memref<8x128xf32, #tpu.memory_space<vmem>>, vector<8x128xf32>
    %c0_4 = arith.constant 0 : index
    %c0_5 = arith.constant 0 : index
    %5 = vector.load %arg4[%c0_4, %c0_5] : memref<128x128xf32, #tpu.memory_space<vmem>>, vector<128x128xf32>
    %cst = arith.constant dense<0.000000e+00> : vector<8x128xf32>
    %6 = tpu.matmul %3, %5, %cst {dimension_numbers = #tpu.dot_dimension_numbers<[1], [1], [0], [0], [0, 0, 1, 0], [], []>} : vector<8x128xf32>, vector<128x128xf32>, vector<8x128xf32> -> vector<8x128xf32>
    %7 = arith.addf %4, %6 : vector<8x128xf32>
    %c0_6 = arith.constant 0 : index
    %c0_7 = arith.constant 0 : index
    %8 = vector.load %arg10[%c0_6, %c0_7] : memref<8x128xf32, #tpu.memory_space<vmem>>, vector<8x128xf32>
    tpu.vector_store %arg10[%c0_6, %c0_7], %7 {strides = array<i32>} : memref<8x128xf32, #tpu.memory_space<vmem>>, vector<8x128xf32>,
    %c0_8 = arith.constant 0 : index
    %c0_9 = arith.constant 0 : index
    %9 = vector.load %arg11[%c0_8, %c0_9] : memref<8x128xf32, #tpu.memory_space<vmem>>, vector<8x128xf32>
    %c0_10 = arith.constant 0 : index
    %c0_11 = arith.constant 0 : index
    %10 = vector.load %arg6[%c0_10, %c0_11] : memref<1x128xf32, #tpu.memory_space<vmem>>, vector<1x128xf32>
    %11 = vector.broadcast %10 : vector<1x128xf32> to vector<8x128xf32>
    %12 = arith.mulf %3, %11 : vector<8x128xf32>
    %c0_12 = arith.constant 0 : index
    %c0_13 = arith.constant 0 : index
    %13 = vector.load %arg5[%c0_12, %c0_13] : memref<128x128xf32, #tpu.memory_space<vmem>>, vector<128x128xf32>
    %cst_14 = arith.constant dense<0.000000e+00> : vector<8x128xf32>
    %14 = tpu.matmul %12, %13, %cst_14 {dimension_numbers = #tpu.dot_dimension_numbers<[1], [1], [0], [0], [0, 0, 1, 0], [], []>} : vector<8x128xf32>, vector<128x128xf32>, vector<8x128xf32> -> vector<8x128xf32>
    %15 = arith.addf %9, %14 : vector<8x128xf32>
    %c0_15 = arith.constant 0 : index
    %c0_16 = arith.constant 0 : index
    %16 = vector.load %arg11[%c0_15, %c0_16] : memref<8x128xf32, #tpu.memory_space<vmem>>, vector<8x128xf32>
    tpu.vector_store %arg11[%c0_15, %c0_16], %15 {strides = array<i32>} : memref<8x128xf32, #tpu.memory_space<vmem>>, vector<8x128xf32>,
    %c0_i32_17 = arith.constant 0 : i32
    %17 = arith.cmpi eq, %arg2, %c0_i32_17 : i32
    %18 = arith.extui %17 : i1 to i32
    %c0_i32_18 = arith.constant 0 : i32
    %19 = arith.cmpi ne, %18, %c0_i32_18 : i32
    scf.if %19 {
      %c0_19 = arith.constant 0 : index
      %c0_20 = arith.constant 0 : index
      %20 = vector.load %arg10[%c0_19, %c0_20] : memref<8x128xf32, #tpu.memory_space<vmem>>, vector<8x128xf32>
      %c0_21 = arith.constant 0 : index
      %c0_22 = arith.constant 0 : index
      %21 = vector.load %arg11[%c0_21, %c0_22] : memref<8x128xf32, #tpu.memory_space<vmem>>, vector<8x128xf32>
      %c0_23 = arith.constant 0 : index
      %c0_24 = arith.constant 0 : index
      %22 = vector.load %arg7[%c0_23, %c0_24] : memref<1x128xf32, #tpu.memory_space<vmem>>, vector<1x128xf32>
      %23 = vector.broadcast %22 : vector<1x128xf32> to vector<8x128xf32>
      %24 = arith.mulf %21, %23 : vector<8x128xf32>
      %25 = arith.addf %20, %24 : vector<8x128xf32>
      %c0_25 = arith.constant 0 : index
      %c0_26 = arith.constant 0 : index
      %26 = vector.load %arg8[%c0_25, %c0_26] : memref<1x128xf32, #tpu.memory_space<vmem>>, vector<1x128xf32>
      %27 = vector.broadcast %26 : vector<1x128xf32> to vector<8x128xf32>
      %28 = arith.addf %25, %27 : vector<8x128xf32>
      %c0_27 = arith.constant 0 : index
      %c0_28 = arith.constant 0 : index
      %29 = vector.load %arg9[%c0_27, %c0_28] : memref<8x128xf32, #tpu.memory_space<vmem>>, vector<8x128xf32>
      tpu.vector_store %arg9[%c0_27, %c0_28], %28 {strides = array<i32>} : memref<8x128xf32, #tpu.memory_space<vmem>>, vector<8x128xf32>,
    } else {
    }
    return
  }
  func.func @transform_0(%arg0: i32, %arg1: i32, %arg2: i32) -> (i32, i32) {
    %c0_i32 = arith.constant 0 : i32
    return %arg0, %arg2 : i32, i32
  }
  func.func @transform_1(%arg0: i32, %arg1: i32, %arg2: i32) -> (i32, i32) {
    %c0_i32 = arith.constant 0 : i32
    return %arg1, %arg2 : i32, i32
  }
  func.func @transform_2(%arg0: i32, %arg1: i32, %arg2: i32) -> (i32, i32) {
    %c0_i32 = arith.constant 0 : i32
    return %arg1, %arg2 : i32, i32
  }
  func.func @transform_3(%arg0: i32, %arg1: i32, %arg2: i32) -> (i32, i32) {
    %c0_i32 = arith.constant 0 : i32
    %c0_i32_0 = arith.constant 0 : i32
    return %c0_i32, %arg2 : i32, i32
  }
  func.func @transform_4(%arg0: i32, %arg1: i32, %arg2: i32) -> (i32, i32) {
    %c0_i32 = arith.constant 0 : i32
    %c0_i32_0 = arith.constant 0 : i32
    return %c0_i32, %arg1 : i32, i32
  }
  func.func @transform_5(%arg0: i32, %arg1: i32, %arg2: i32) -> (i32, i32) {
    %c0_i32 = arith.constant 0 : i32
    %c0_i32_0 = arith.constant 0 : i32
    return %c0_i32, %arg1 : i32, i32
  }
  func.func @transform_6(%arg0: i32, %arg1: i32, %arg2: i32) -> (i32, i32) {
    %c0_i32 = arith.constant 0 : i32
    return %arg0, %arg1 : i32, i32
  }
}

</mosaic_0001>

<llo_original>
// kernel: tpu_custom_call.1
$region0: #{tpu_custom_call.1}
  #allocation0 [shape = 'u32[]', space=smem, size = 0x4, offset = 0x4, fixed_abs, tag = 'smem constant byte address 0x4 - core index']
  #allocation1 [shape = 'u32[144,128]{1,0:T(1,128)}', space=vmem, size = 0x12000, scoped, tag = 'internal scratch']
  #allocation2 [shape = 'f32[8,128]{1,0:T(8,128)}', space=vmem, size = 0x1000, scoped, tag = 'scratch operand']
  #allocation3 [shape = 'f32[8,128]{1,0:T(8,128)}', space=vmem, size = 0x1000, scoped, tag = 'scratch operand']
  %s0 = inlined_call_operand.hbm [shape: f32[8,128], index: 0, kind: input, shape index: {}]
  %s1 = inlined_call_operand.hbm [shape: f32[128,128], index: 1, kind: input, shape index: {}]
  %s2 = inlined_call_operand.hbm [shape: f32[128,128], index: 2, kind: input, shape index: {}]
  %s3 = inlined_call_operand.vmem [shape: f32[1,128], index: 3, kind: input, shape index: {}]
  %s4 = inlined_call_operand.vmem [shape: f32[1,128], index: 4, kind: input, shape index: {}]
  %s5 = inlined_call_operand.vmem [shape: f32[1,128], index: 5, kind: input, shape index: {}]
  %s6 = inlined_call_operand.hbm [shape: f32[8,128], index: 6, kind: output, shape index: {}]
  %s7 = sld [smem:[#allocation0]]
  $region54: #{tpu_custom_call.1} parent=0
    _
  %s9 = ssub.s32 1, %s7
  %s10 = scalar_select 0, %s9, %s7
  $region1: #{tpu_custom_call.1} parent=0
    #allocation4 [shape = 'u8[4096]{0}', space=vmem, size = 0x1000, scoped, tag = 'input window, operand 0, single buffered']
    #allocation5 [shape = 's32[1]{0}', space=sflag, size = 0x4, scoped, tag = 'scoped memory for tpu_custom_call.1']
    #allocation6 [shape = 's32[1]{0}', space=sflag, size = 0x4, scoped, tag = 'scoped memory for tpu_custom_call.1']
    #allocation7 [shape = 'u8[65536]{0}', space=vmem, size = 0x10000, scoped, tag = 'input window, operand 1, single buffered']
    #allocation8 [shape = 's32[1]{0}', space=sflag, size = 0x4, scoped, tag = 'scoped memory for tpu_custom_call.1']
    #allocation9 [shape = 'u8[65536]{0}', space=vmem, size = 0x10000, scoped, tag = 'input window, operand 2, single buffered']
    #allocation10 [shape = 'u8[4096]{0}', space=vmem, size = 0x1000, scoped, tag = 'output window, operand 0, single buffered']
    %11 = vsyncpa [#allocation5], 0
    %12 = vsyncpa [#allocation8], 0
    %13 = vsyncpa [#allocation6], 0
    // Predicated region
    $region2: #{tpu_custom_call.1} parent=1 // pred_check
      _
    $region3: #{tpu_custom_call.1} parent=1 // pred_check_branch
      %15 = sbr.rel (0) target = $region5
    $region4: #{tpu_custom_call.1} parent=1 // pred_region
      %s17 = ssub.s32 128, 128
      %18 = vsyncadd [#allocation5], %s17
      %s20 = sshll.u32 [#allocation4], 4
      %s21 = int_to_ptr.vmem [resolvable:$true] %s20
      %23 = dma.hbm_to_vmem [thread:$0]  %s0, 128, %s21, [#allocation5]
    $region5: #{tpu_custom_call.1} parent=1 // pred_fallthru
      _
    // Predicated region
    $region6: #{tpu_custom_call.1} parent=1 // pred_check
      _
    $region7: #{tpu_custom_call.1} parent=1 // pred_check_branch
      %25 = sbr.rel (0) target = $region9
    $region8: #{tpu_custom_call.1} parent=1 // pred_region
      %s27 = ssub.s32 2048, 2048
      %28 = vsyncadd [#allocation8], %s27
      %s29 = sshll.u32 [#allocation7], 4
      %s30 = int_to_ptr.vmem [resolvable:$true] %s29
      %35 = dma.hbm_to_vmem [thread:$0]  %s1, 2048, %s30, [#allocation8], 128, 128, 8
    $region9: #{tpu_custom_call.1} parent=1 // pred_fallthru
      _
    // Predicated region
    $region10: #{tpu_custom_call.1} parent=1 // pred_check
      _
    $region11: #{tpu_custom_call.1} parent=1 // pred_check_branch
      %37 = sbr.rel (0) target = $region13
    $region12: #{tpu_custom_call.1} parent=1 // pred_region
      %s39 = ssub.s32 2048, 2048
      %40 = vsyncadd [#allocation8], %s39
      %s41 = sshll.u32 [#allocation9], 4
      %s42 = int_to_ptr.vmem [resolvable:$true] %s41
      %47 = dma.hbm_to_vmem [thread:$0]  %s2, 2048, %s42, [#allocation8], 128, 128, 8
    $region13: #{tpu_custom_call.1} parent=1 // pred_fallthru
      _
    // Predicated region
    $region14: #{tpu_custom_call.1} parent=1 // pred_check
      _
    $region15: #{tpu_custom_call.1} parent=1 // pred_check_branch
      %49 = sbr.rel (0) target = $region17
    $region16: #{tpu_custom_call.1} parent=1 // pred_region
      _
    $region17: #{tpu_custom_call.1} parent=1 // pred_fallthru
      _
    // Predicated region
    $region18: #{tpu_custom_call.1} parent=1 // pred_check
      _
    $region19: #{tpu_custom_call.1} parent=1 // pred_check_branch
      %51 = sbr.rel (0) target = $region21
    $region20: #{tpu_custom_call.1} parent=1 // pred_region
      _
    $region21: #{tpu_custom_call.1} parent=1 // pred_fallthru
      _
    // Predicated region
    $region22: #{tpu_custom_call.1} parent=1 // pred_check
      _
    $region23: #{tpu_custom_call.1} parent=1 // pred_check_branch
      %53 = sbr.rel (0) target = $region25
    $region24: #{tpu_custom_call.1} parent=1 // pred_region
      _
    $region25: #{tpu_custom_call.1} parent=1 // pred_fallthru
      _
    // Predicated region
    $region26: #{tpu_custom_call.1} parent=1 // pred_check
      _
    $region27: #{tpu_custom_call.1} parent=1 // pred_check_branch
      %55 = sbr.rel (0) target = $region29
    $region28: #{tpu_custom_call.1} parent=1 // pred_region
      %56 = dma.done [#allocation5], 128
    $region29: #{tpu_custom_call.1} parent=1 // pred_fallthru
      _
    // Predicated region
    $region30: #{tpu_custom_call.1} parent=1 // pred_check
      _
    $region31: #{tpu_custom_call.1} parent=1 // pred_check_branch
      %58 = sbr.rel (0) target = $region33
    $region32: #{tpu_custom_call.1} parent=1 // pred_region
      %59 = dma.done [#allocation8], 2048
    $region33: #{tpu_custom_call.1} parent=1 // pred_fallthru
      _
    // Predicated region
    $region34: #{tpu_custom_call.1} parent=1 // pred_check
      _
    $region35: #{tpu_custom_call.1} parent=1 // pred_check_branch
      %61 = sbr.rel (0) target = $region37
    $region36: #{tpu_custom_call.1} parent=1 // pred_region
      %62 = dma.done [#allocation8], 2048
    $region37: #{tpu_custom_call.1} parent=1 // pred_fallthru
      _
    %p63 = scmp.eq.s32.totalorder 0, 0
    // Predicated region
    $region38: #{tpu_custom_call.1} parent=1 // pred_check
      %p64 = pneg %p63
    $region39: #{tpu_custom_call.1} parent=1 // pred_check_branch
      %66 = sbr.rel (%p64) target = $region41
    $region40: #{tpu_custom_call.1} parent=1 // pred_region
      %67 = vst [vmem:[#allocation2] sm:$0xff] 0.0
      %68 = vst [vmem:[#allocation3] sm:$0xff] 0.0
    $region41: #{tpu_custom_call.1} parent=1 // pred_fallthru
      _
    %v69 = vld [vmem:[#allocation4] sm:$0xff]
    %v70 = vld [vmem:[#allocation2] sm:$0xff]
    %v71 = vld [vmem:[#allocation7] sm:$0xff]
    %v72 = vld [vmem:[#allocation7 + $0x8] sm:$0xff]
    %v73 = vld [vmem:[#allocation7 + $0x10] sm:$0xff]
    %v74 = vld [vmem:[#allocation7 + $0x18] sm:$0xff]
    %v75 = vld [vmem:[#allocation7 + $0x20] sm:$0xff]
    %v76 = vld [vmem:[#allocation7 + $0x28] sm:$0xff]
    %v77 = vld [vmem:[#allocation7 + $0x30] sm:$0xff]
    %v78 = vld [vmem:[#allocation7 + $0x38] sm:$0xff]
    %v79 = vld [vmem:[#allocation7 + $0x40] sm:$0xff]
    %v80 = vld [vmem:[#allocation7 + $0x48] sm:$0xff]
    %v81 = vld [vmem:[#allocation7 + $0x50] sm:$0xff]
    %v82 = vld [vmem:[#allocation7 + $0x58] sm:$0xff]
    %v83 = vld [vmem:[#allocation7 + $0x60] sm:$0xff]
    %v84 = vld [vmem:[#allocation7 + $0x68] sm:$0xff]
    %v85 = vld [vmem:[#allocation7 + $0x70] sm:$0xff]
    %v86 = vld [vmem:[#allocation7 + $0x78] sm:$0xff]
    %87 = vmatprep.subr.mxu0 0.0
    %88 = vmatpush1.xpose.msra.mxu0 %v71
    %89 = vmatprep.subr.mxu0 0.0
    %90 = vmatpush1.xpose.msra.mxu0 %v72
    %91 = vmatprep.subr.mxu0 0.0
    %92 = vmatpush1.xpose.msra.mxu0 %v73
    %93 = vmatprep.subr.mxu0 0.0
    %94 = vmatpush1.xpose.msra.mxu0 %v74
    %95 = vmatprep.subr.mxu0 0.0
    %96 = vmatpush1.xpose.msra.mxu0 %v75
    %97 = vmatprep.subr.mxu0 0.0
    %98 = vmatpush1.xpose.msra.mxu0 %v76
    %99 = vmatprep.subr.mxu0 0.0
    %100 = vmatpush1.xpose.msra.mxu0 %v77
    %101 = vmatprep.subr.mxu0 0.0
    %102 = vmatpush1.xpose.msra.mxu0 %v78
    %103 = vmatprep.subr.mxu0 0.0
    %104 = vmatpush1.xpose.msra.mxu0 %v79
    %105 = vmatprep.subr.mxu0 0.0
    %106 = vmatpush1.xpose.msra.mxu0 %v80
    %107 = vmatprep.subr.mxu0 0.0
    %108 = vmatpush1.xpose.msra.mxu0 %v81
    %109 = vmatprep.subr.mxu0 0.0
    %110 = vmatpush1.xpose.msra.mxu0 %v82
    %111 = vmatprep.subr.mxu0 0.0
    %112 = vmatpush1.xpose.msra.mxu0 %v83
    %113 = vmatprep.subr.mxu0 0.0
    %114 = vmatpush1.xpose.msra.mxu0 %v84
    %115 = vmatprep.subr.mxu0 0.0
    %116 = vmatpush1.xpose.msra.mxu0 %v85
    %117 = vmatprep.subr.mxu0 0.0
    %118 = vmatpush1.xpose.msra.mxu0 %v86
    %119 = vmatprep.subr.mxu0 0.0
    %120 = vmatpush1.xpose.msra.mxu0 0.0
    %121 = vmatprep.subr.mxu0 0.0
    %122 = vmatpush1.xpose.msra.mxu0 0.0
    %123 = vmatprep.subr.mxu0 0.0
    %124 = vmatpush1.xpose.msra.mxu0 0.0
    %125 = vmatprep.subr.mxu0 0.0
    %126 = vmatpush1.xpose.msra.mxu0 0.0
    %127 = vmatprep.subr.mxu0 0.0
    %128 = vmatpush1.xpose.msra.mxu0 0.0
    %129 = vmatprep.subr.mxu0 0.0
    %130 = vmatpush1.xpose.msra.mxu0 0.0
    %131 = vmatprep.subr.mxu0 0.0
    %132 = vmatpush1.xpose.msra.mxu0 0.0
    %133 = vmatprep.subr.mxu0 0.0
    %134 = vmatpush1.xpose.msra.mxu0 0.0
    %135 = vmatprep.subr.mxu0 0.0
    %136 = vmatpush1.xpose.msra.mxu0 0.0
    %137 = vmatprep.subr.mxu0 0.0
    %138 = vmatpush1.xpose.msra.mxu0 0.0
    %139 = vmatprep.subr.mxu0 0.0
    %140 = vmatpush1.xpose.msra.mxu0 0.0
    %141 = vmatprep.subr.mxu0 0.0
    %142 = vmatpush1.xpose.msra.mxu0 0.0
    %143 = vmatprep.subr.mxu0 0.0
    %144 = vmatpush1.xpose.msra.mxu0 0.0
    %145 = vmatprep.subr.mxu0 0.0
    %146 = vmatpush1.xpose.msra.mxu0 0.0
    %147 = vmatprep.subr.mxu0 0.0
    %148 = vmatpush1.xpose.msra.mxu0 0.0
    %149 = vmatprep.subr.mxu0 0.0
    %150 = vmatpush1.xpose.msra.mxu0 0.0
    %151 = vmatprep.mubr.f32.mxu0 0.0
    %152 = vmatmul.mubr.f32.gmra.mrb[0].mxu0 %v69
    %v153 = vpop.f32.mrb[0].mxu0
    %v154 = vadd.f32 0.0, %v153
    %v155 = vpop.f32.mrb[0].mxu0
    %156 = vdwg.mxu0
    %v157 = vadd.f32 %v70, %v154
    %158 = vst [vmem:[#allocation2] sm:$0xff] %v157
    %v159 = vld [vmem:[#allocation3] sm:$0xff]
    %v160 = vld [vmem:[%s3] sm:$0x1]
    %v162 = vlaneseq
    %v163 = vshrl.u32 %v162, 7
    %v164 = vsub.s32 0, %v163
    %v165 = vrot.slane %v160, %v164
    %v167 = vmul.f32 %v69, %v165
    %v168 = vld [vmem:[#allocation9] sm:$0xff]
    %v169 = vld [vmem:[#allocation9 + $0x8] sm:$0xff]
    %v170 = vld [vmem:[#allocation9 + $0x10] sm:$0xff]
    %v171 = vld [vmem:[#allocation9 + $0x18] sm:$0xff]
    %v172 = vld [vmem:[#allocation9 + $0x20] sm:$0xff]
    %v173 = vld [vmem:[#allocation9 + $0x28] sm:$0xff]
    %v174 = vld [vmem:[#allocation9 + $0x30] sm:$0xff]
    %v175 = vld [vmem:[#allocation9 + $0x38] sm:$0xff]
    %v176 = vld [vmem:[#allocation9 + $0x40] sm:$0xff]
    %v177 = vld [vmem:[#allocation9 + $0x48] sm:$0xff]
    %v178 = vld [vmem:[#allocation9 + $0x50] sm:$0xff]
    %v179 = vld [vmem:[#allocation9 + $0x58] sm:$0xff]
    %v180 = vld [vmem:[#allocation9 + $0x60] sm:$0xff]
    %v181 = vld [vmem:[#allocation9 + $0x68] sm:$0xff]
    %v182 = vld [vmem:[#allocation9 + $0x70] sm:$0xff]
    %v183 = vld [vmem:[#allocation9 + $0x78] sm:$0xff]
    %184 = vmatprep.subr.mxu0 0.0
    %185 = vmatpush1.xpose.msra.mxu0 %v168
    %186 = vmatprep.subr.mxu0 0.0
    %187 = vmatpush1.xpose.msra.mxu0 %v169
    %188 = vmatprep.subr.mxu0 0.0
    %189 = vmatpush1.xpose.msra.mxu0 %v170
    %190 = vmatprep.subr.mxu0 0.0
    %191 = vmatpush1.xpose.msra.mxu0 %v171
    %192 = vmatprep.subr.mxu0 0.0
    %193 = vmatpush1.xpose.msra.mxu0 %v172
    %194 = vmatprep.subr.mxu0 0.0
    %195 = vmatpush1.xpose.msra.mxu0 %v173
    %196 = vmatprep.subr.mxu0 0.0
    %197 = vmatpush1.xpose.msra.mxu0 %v174
    %198 = vmatprep.subr.mxu0 0.0
    %199 = vmatpush1.xpose.msra.mxu0 %v175
    %200 = vmatprep.subr.mxu0 0.0
    %201 = vmatpush1.xpose.msra.mxu0 %v176
    %202 = vmatprep.subr.mxu0 0.0
    %203 = vmatpush1.xpose.msra.mxu0 %v177
    %204 = vmatprep.subr.mxu0 0.0
    %205 = vmatpush1.xpose.msra.mxu0 %v178
    %206 = vmatprep.subr.mxu0 0.0
    %207 = vmatpush1.xpose.msra.mxu0 %v179
    %208 = vmatprep.subr.mxu0 0.0
    %209 = vmatpush1.xpose.msra.mxu0 %v180
    %210 = vmatprep.subr.mxu0 0.0
    %211 = vmatpush1.xpose.msra.mxu0 %v181
    %212 = vmatprep.subr.mxu0 0.0
    %213 = vmatpush1.xpose.msra.mxu0 %v182
    %214 = vmatprep.subr.mxu0 0.0
    %215 = vmatpush1.xpose.msra.mxu0 %v183
    %216 = vmatprep.subr.mxu0 0.0
    %217 = vmatpush1.xpose.msra.mxu0 0.0
    %218 = vmatprep.subr.mxu0 0.0
    %219 = vmatpush1.xpose.msra.mxu0 0.0
    %220 = vmatprep.subr.mxu0 0.0
    %221 = vmatpush1.xpose.msra.mxu0 0.0
    %222 = vmatprep.subr.mxu0 0.0
    %223 = vmatpush1.xpose.msra.mxu0 0.0
    %224 = vmatprep.subr.mxu0 0.0
    %225 = vmatpush1.xpose.msra.mxu0 0.0
    %226 = vmatprep.subr.mxu0 0.0
    %227 = vmatpush1.xpose.msra.mxu0 0.0
    %228 = vmatprep.subr.mxu0 0.0
    %229 = vmatpush1.xpose.msra.mxu0 0.0
    %230 = vmatprep.subr.mxu0 0.0
    %231 = vmatpush1.xpose.msra.mxu0 0.0
    %232 = vmatprep.subr.mxu0 0.0
    %233 = vmatpush1.xpose.msra.mxu0 0.0
    %234 = vmatprep.subr.mxu0 0.0
    %235 = vmatpush1.xpose.msra.mxu0 0.0
    %236 = vmatprep.subr.mxu0 0.0
    %237 = vmatpush1.xpose.msra.mxu0 0.0
    %238 = vmatprep.subr.mxu0 0.0
    %239 = vmatpush1.xpose.msra.mxu0 0.0
    %240 = vmatprep.subr.mxu0 0.0
    %241 = vmatpush1.xpose.msra.mxu0 0.0
    %242 = vmatprep.subr.mxu0 0.0
    %243 = vmatpush1.xpose.msra.mxu0 0.0
    %244 = vmatprep.subr.mxu0 0.0
    %245 = vmatpush1.xpose.msra.mxu0 0.0
    %246 = vmatprep.subr.mxu0 0.0
    %247 = vmatpush1.xpose.msra.mxu0 0.0
    %248 = vmatprep.mubr.f32.mxu0 0.0
    %249 = vmatmul.mubr.f32.gmra.mrb[0].mxu0 %v167
    %v250 = vpop.f32.mrb[0].mxu0
    %v251 = vadd.f32 0.0, %v250
    %v252 = vpop.f32.mrb[0].mxu0
    %253 = vdwg.mxu0
    %v254 = vadd.f32 %v159, %v251
    %255 = vst [vmem:[#allocation3] sm:$0xff] %v254
    // Predicated region
    $region42: #{tpu_custom_call.1} parent=1 // pred_check
      %p256 = pneg %p63
    $region43: #{tpu_custom_call.1} parent=1 // pred_check_branch
      %258 = sbr.rel (%p256) target = $region45
    $region44: #{tpu_custom_call.1} parent=1 // pred_region
      %v259 = vld [vmem:[#allocation2] sm:$0xff]
      %v260 = vld [vmem:[#allocation3] sm:$0xff]
      %v261 = vld [vmem:[%s4] sm:$0x1]
      %v263 = vlaneseq
      %v264 = vshrl.u32 %v263, 7
      %v265 = vsub.s32 0, %v264
      %v266 = vrot.slane %v261, %v265
      %v268 = vmul.f32 %v260, %v266
      %v269 = vadd.f32 %v259, %v268
      %v270 = vld [vmem:[%s5] sm:$0x1]
      %v272 = vlaneseq
      %v273 = vshrl.u32 %v272, 7
      %v274 = vsub.s32 0, %v273
      %v275 = vrot.slane %v270, %v274
      %v277 = vadd.f32 %v269, %v275
      %278 = vst [vmem:[#allocation10] sm:$0xff] %v277
    $region45: #{tpu_custom_call.1} parent=1 // pred_fallthru
      _
    // Predicated region
    $region46: #{tpu_custom_call.1} parent=1 // pred_check
      _
    $region47: #{tpu_custom_call.1} parent=1 // pred_check_branch
      %280 = sbr.rel (0) target = $region49
    $region48: #{tpu_custom_call.1} parent=1 // pred_region
      %s282 = ssub.s32 128, 128
      %283 = vsyncadd [#allocation6], %s282
      %s285 = sshll.u32 [#allocation10], 4
      %s286 = int_to_ptr.vmem [resolvable:$true] %s285
      %288 = dma.vmem_to_hbm [thread:$0]  %s286, 128, %s6, [#allocation6]
    $region49: #{tpu_custom_call.1} parent=1 // pred_fallthru
      _
    // Predicated region
    $region50: #{tpu_custom_call.1} parent=1 // pred_check
      _
    $region51: #{tpu_custom_call.1} parent=1 // pred_check_branch
      %290 = sbr.rel (0) target = $region53
    $region52: #{tpu_custom_call.1} parent=1 // pred_region
      %291 = dma.done [#allocation6], 128
    $region53: #{tpu_custom_call.1} parent=1 // pred_fallthru
      _
    %292 = vsyncpa [#allocation5], 1
    %293 = vsyncpa [#allocation8], 1
    %294 = vsyncpa [#allocation6], 1

</llo_original>
